<compile_context>
chip_gen: v7x
topology: tpu7x:2x2x1
jax: 0.10.0
libtpu: 0.0.40
codegen_flags: <defaults>
</compile_context>

<pallas_src>
import functools

import jax
import jax.numpy as jnp
from jax.experimental import pallas as pl
from jax.experimental.pallas import tpu as pltpu


def _round_up(x: int, m: int) -> int:
    return ((x + m - 1) // m) * m


def _sublane_multiple(dtype) -> int:
    # f32 -> 8, bf16 -> 16, int8/fp8 -> 32 (sub-32-bit dtypes pack along sublanes).
    return max(8, 32 // jnp.dtype(dtype).itemsize)


def _spec(block_shape, index_map, buffering=None):
    if buffering is None:
        return pl.BlockSpec(block_shape, index_map)
    return pl.BlockSpec(block_shape, index_map, pipeline_mode=buffering)


def _probe_kernel(x_ref, o_ref):
    o_ref[...] = x_ref[...]


@functools.lru_cache(maxsize=None)
def _single_buffer_mode():
    """Feature-detect pl.Buffered(1) (single-buffered grid-invariant operands).

    Returns the pipeline mode if this JAX/Mosaic build supports it, else None.
    Probed once with a tiny copy kernel so the real kernel never risks failing.
    """
    try:
        mode = pl.Buffered(1)
        f = pl.pallas_call(
            _probe_kernel,
            out_shape=jax.ShapeDtypeStruct((16, 128), jnp.float32),
            grid_spec=pl.GridSpec(
                grid=(2,),
                in_specs=[pl.BlockSpec((8, 128), lambda i: (0, 0),
                                       pipeline_mode=mode)],
                out_specs=pl.BlockSpec((8, 128), lambda i: (i, 0)),
            ),
        )
        jax.block_until_ready(f(jnp.ones((8, 128), jnp.float32)))
        return mode
    except Exception:
        return None


def _linear_kernel(x_ref, w_ref, b_ref, o_ref):
    # x_ref: [tb, Cin]   w_ref: [Cin, tn] (pre-transposed)   b_ref: [1, tn]
    acc = jnp.dot(x_ref[...], w_ref[...], preferred_element_type=jnp.float32)
    o_ref[...] = (acc + b_ref[...]).astype(o_ref.dtype)


def prepare_params(weight, bias):
    """One-time (load-time) prep: transpose to [Cin, Cout] and zero-pad Cout to 128.

    Padded columns are zero, so slicing the output back to Cout gives exactly
    x @ W^T + b. (For very large, non-128-multiple Cin one could also pad Cin
    here, but that would require the caller to pad x; not worth it at Cin=32.)
    """
    c_out, c_in = weight.shape
    c_out_pad = _round_up(c_out, 128)
    w_t = jnp.zeros((c_in, c_out_pad), weight.dtype).at[:, :c_out].set(weight.T)
    b_pad = jnp.zeros((1, c_out_pad), bias.dtype).at[0, :c_out].set(bias)
    return w_t, b_pad


@functools.partial(jax.jit, static_argnames=("n_channels_out", "block_b"))
def mock_model_forward(x, w_t, b_pad, *, n_channels_out, block_b=512):
    """x: [B, Cin]; w_t: [Cin, Cout_pad]; b_pad: [1, Cout_pad] -> [B, n_channels_out]."""
    b, c_in = x.shape
    c_out_pad = w_t.shape[1]
    itemsize = jnp.dtype(x.dtype).itemsize

    # ---- Batch tiling: no hot-path padding; ragged last block is masked. ----
    sub = _sublane_multiple(x.dtype)
    if b <= sub:
        tb = b  # single block == full array dim (layout-legal)
    else:
        # Aim for >= 2 grid steps so v7x's second TensorCore gets work.
        tb = min(_round_up(block_b, sub), _round_up(pl.cdiv(b, 2), sub))
    n_b = pl.cdiv(b, tb)

    # ---- Cout tiling: keep the resident weight tile under a VMEM budget. ----
    max_w_tile_bytes = 16 << 20  # conservative vs. v7x's 64 MiB physical VMEM
    max_cols = max(128, ((max_w_tile_bytes // (c_in * itemsize)) // 128) * 128)
    tn = min(c_out_pad, max_cols)
    n_n = pl.cdiv(c_out_pad, tn)
    # NOTE: for very large Cin a K-reduction grid axis (VMEM f32 accumulator,
    # pl.when init/finalize) would be the next step; not needed at these shapes.

    # Grid-invariant weight/bias (single Cout tile) -> single-buffer if supported.
    wb_mode = _single_buffer_mode() if n_n == 1 else None
    w_bufs = 1 if wb_mode is not None else 2

    # ---- Explicit scoped-VMEM limit sized from the actual tiles. ----
    need = (w_bufs * (c_in * tn + tn) + 2 * tb * c_in + 2 * tb * tn) * itemsize
    vmem_limit = int(min(max(2 * need + (8 << 20), 32 << 20), 60 << 20))

    out = pl.pallas_call(
        _linear_kernel,
        out_shape=jax.ShapeDtypeStruct((b, c_out_pad), x.dtype),
        grid_spec=pl.GridSpec(
            # Cout tiles outer (weight fetched once), batch tiles inner (streamed).
            grid=(n_n, n_b),
            in_specs=[
                _spec((tb, c_in), lambda j, i: (i, 0)),            # x (streamed)
                _spec((c_in, tn), lambda j, i: (0, j), wb_mode),   # weight (resident)
                _spec((1, tn), lambda j, i: (0, j), wb_mode),      # bias  (resident)
            ],
            out_specs=pl.BlockSpec((tb, tn), lambda j, i: (i, j)),
        ),
        compiler_params=pltpu.CompilerParams(
            dimension_semantics=("parallel", "parallel"),
            vmem_limit_bytes=vmem_limit,
        ),
    )(x, w_t, b_pad)

    return out[:, :n_channels_out]


if __name__ == "__main__":
    # Small shapes consistent with the module: Linear(n_channels_in=32, n_channels_out=16)
    n_channels_in, n_channels_out = 32, 16

    key = jax.random.PRNGKey(0)
    kx, kw, kb, kx2 = jax.random.split(key, 4)

    # Deterministic torch-like init: uniform(-1/sqrt(fan_in), 1/sqrt(fan_in))
    bound = 1.0 / (n_channels_in ** 0.5)
    weight = jax.random.uniform(kw, (n_channels_out, n_channels_in),
                                minval=-bound, maxval=bound, dtype=jnp.float32)
    bias = jax.random.uniform(kb, (n_channels_out,),
                              minval=-bound, maxval=bound, dtype=jnp.float32)

    # Load-time prep (off the hot path), then the forward call.
    w_t, b_pad = prepare_params(weight, bias)

    batch = 8
    x = jax.random.normal(kx, (batch, n_channels_in), dtype=jnp.float32)
    out = mock_model_forward(x, w_t, b_pad, n_channels_out=n_channels_out)
    jax.block_until_ready(out)

    ref = x @ weight.T + bias
    assert out.shape == (batch, n_channels_out)
    assert jnp.allclose(out, ref, atol=1e-5, rtol=1e-5)

    # Extra correctness check: a non-tile-multiple batch exercises the
    # unpadded ragged-final-block path and a 2-step (v7x-parallel) batch grid.
    x2 = jax.random.normal(kx2, (13, n_channels_in), dtype=jnp.float32)
    out2 = mock_model_forward(x2, w_t, b_pad, n_channels_out=n_channels_out)
    jax.block_until_ready(out2)
    ref2 = x2 @ weight.T + bias
    assert out2.shape == (13, n_channels_out)
    assert jnp.allclose(out2, ref2, atol=1e-5, rtol=1e-5)

    print("KERNEL_OK")
</pallas_src>

<mosaic_0001>
module attributes {stable_mosaic.version = 11 : i64} {
  func.func @_linear_kernel(%arg0: i32, %arg1: i32, %arg2: memref<8x32xf32, #tpu.memory_space<vmem>>, %arg3: memref<32x128xf32, #tpu.memory_space<vmem>>, %arg4: memref<1x128xf32, #tpu.memory_space<vmem>>, %arg5: memref<8x128xf32, #tpu.memory_space<vmem>>) attributes {dimension_semantics = [#tpu.dimension_semantics<parallel>, #tpu.dimension_semantics<parallel>], iteration_bounds = array<i64: 1, 1>, scalar_prefetch = 0 : i64, scratch_operands = 0 : i64, tpu.core_type = #tpu.core_type<tc>, window_params = [{transform_indices = @transform_0, window_bounds = array<i64: 8, 32>}, {pipeline_mode = #tpu.pipeline_mode<synchronous>, transform_indices = @transform_1, window_bounds = array<i64: 32, 128>}, {pipeline_mode = #tpu.pipeline_mode<synchronous>, transform_indices = @transform_2, window_bounds = array<i64: 1, 128>}, {transform_indices = @transform_3, window_bounds = array<i64: 8, 128>}]} {
    %c0 = arith.constant 0 : index
    %c0_0 = arith.constant 0 : index
    %0 = vector.load %arg2[%c0, %c0_0] : memref<8x32xf32, #tpu.memory_space<vmem>>, vector<8x32xf32>
    %c0_1 = arith.constant 0 : index
    %c0_2 = arith.constant 0 : index
    %1 = vector.load %arg3[%c0_1, %c0_2] : memref<32x128xf32, #tpu.memory_space<vmem>>, vector<32x128xf32>
    %cst = arith.constant dense<0.000000e+00> : vector<8x128xf32>
    %2 = tpu.matmul %0, %1, %cst {dimension_numbers = #tpu.dot_dimension_numbers<[1], [0], [0], [1], [0, 0, 1, 1], [], []>} : vector<8x32xf32>, vector<32x128xf32>, vector<8x128xf32> -> vector<8x128xf32>
    %c0_3 = arith.constant 0 : index
    %c0_4 = arith.constant 0 : index
    %3 = vector.load %arg4[%c0_3, %c0_4] : memref<1x128xf32, #tpu.memory_space<vmem>>, vector<1x128xf32>
    %4 = vector.broadcast %3 : vector<1x128xf32> to vector<8x128xf32>
    %5 = arith.addf %2, %4 : vector<8x128xf32>
    %c0_5 = arith.constant 0 : index
    %c0_6 = arith.constant 0 : index
    %6 = vector.load %arg5[%c0_5, %c0_6] : memref<8x128xf32, #tpu.memory_space<vmem>>, vector<8x128xf32>
    tpu.vector_store %arg5[%c0_5, %c0_6], %5 {strides = array<i32>} : memref<8x128xf32, #tpu.memory_space<vmem>>, vector<8x128xf32>,
    return
  }
  func.func @transform_0(%arg0: i32, %arg1: i32) -> (i32, i32) {
    %c0_i32 = arith.constant 0 : i32
    %c0_i32_0 = arith.constant 0 : i32
    return %arg1, %c0_i32 : i32, i32
  }
  func.func @transform_1(%arg0: i32, %arg1: i32) -> (i32, i32) {
    %c0_i32 = arith.constant 0 : i32
    %c0_i32_0 = arith.constant 0 : i32
    return %c0_i32, %arg0 : i32, i32
  }
  func.func @transform_2(%arg0: i32, %arg1: i32) -> (i32, i32) {
    %c0_i32 = arith.constant 0 : i32
    %c0_i32_0 = arith.constant 0 : i32
    return %c0_i32, %arg0 : i32, i32
  }
  func.func @transform_3(%arg0: i32, %arg1: i32) -> (i32, i32) {
    %c0_i32 = arith.constant 0 : i32
    return %arg1, %arg0 : i32, i32
  }
}

</mosaic_0001>

<llo_original>
// kernel: mock_model_forward.1
$region0: #{mock_model_forward.1}
  #allocation0 [shape = 'u32[]', space=smem, size = 0x4, offset = 0x4, fixed_abs, tag = 'smem constant byte address 0x4 - core index']
  #allocation1 [shape = 'u32[144,128]{1,0:T(1,128)}', space=vmem, size = 0x12000, scoped, tag = 'internal scratch']
  %s0 = inlined_call_operand.hbm [shape: f32[8,32], index: 0, kind: input, shape index: {}]
  %s1 = inlined_call_operand.hbm [shape: f32[32,128], index: 1, kind: input, shape index: {}]
  %s2 = inlined_call_operand.vmem [shape: f32[1,128], index: 2, kind: input, shape index: {}]
  %s3 = inlined_call_operand.hbm [shape: f32[8,128], index: 3, kind: output, shape index: {}]
  %s4 = sld [smem:[#allocation0]]
  $region30: #{mock_model_forward.1} parent=0
    _
  %s6 = ssub.s32 1, %s4
  %s7 = scalar_select 0, %s6, %s4
  $region1: #{mock_model_forward.1} parent=0
    #allocation2 [shape = 'u8[4096]{0}', space=vmem, size = 0x1000, scoped, tag = 'input window, operand 0, single buffered']
    #allocation3 [shape = 's32[1]{0}', space=sflag, size = 0x4, scoped, tag = 'scoped memory for mock_model_forward.1']
    #allocation4 [shape = 's32[1]{0}', space=sflag, size = 0x4, scoped, tag = 'scoped memory for mock_model_forward.1']
    #allocation5 [shape = 'u8[16384]{0}', space=vmem, size = 0x4000, scoped, tag = 'input window, operand 1, single buffered']
    #allocation6 [shape = 's32[1]{0}', space=sflag, size = 0x4, scoped, tag = 'scoped memory for mock_model_forward.1']
    #allocation7 [shape = 'u8[4096]{0}', space=vmem, size = 0x1000, scoped, tag = 'output window, operand 0, single buffered']
    %8 = vsyncpa [#allocation3], 0
    %9 = vsyncpa [#allocation6], 0
    %10 = vsyncpa [#allocation4], 0
    // Predicated region
    $region2: #{mock_model_forward.1} parent=1 // pred_check
      _
    $region3: #{mock_model_forward.1} parent=1 // pred_check_branch
      %12 = sbr.rel (0) target = $region5
    $region4: #{mock_model_forward.1} parent=1 // pred_region
      %s14 = ssub.s32 128, 128
      %15 = vsyncadd [#allocation3], %s14
      %s17 = sshll.u32 [#allocation2], 4
      %s18 = int_to_ptr.vmem [resolvable:$true] %s17
      %20 = dma.hbm_to_vmem [thread:$0]  %s0, 128, %s18, [#allocation3]
    $region5: #{mock_model_forward.1} parent=1 // pred_fallthru
      _
    // Predicated region
    $region6: #{mock_model_forward.1} parent=1 // pred_check
      _
    $region7: #{mock_model_forward.1} parent=1 // pred_check_branch
      %22 = sbr.rel (0) target = $region9
    $region8: #{mock_model_forward.1} parent=1 // pred_region
      %s24 = ssub.s32 512, 512
      %25 = vsyncadd [#allocation6], %s24
      %s26 = sshll.u32 [#allocation5], 4
      %s27 = int_to_ptr.vmem [resolvable:$true] %s26
      %32 = dma.hbm_to_vmem [thread:$0]  %s1, 512, %s27, [#allocation6], 128, 128, 8
    $region9: #{mock_model_forward.1} parent=1 // pred_fallthru
      _
    // Predicated region
    $region10: #{mock_model_forward.1} parent=1 // pred_check
      _
    $region11: #{mock_model_forward.1} parent=1 // pred_check_branch
      %34 = sbr.rel (0) target = $region13
    $region12: #{mock_model_forward.1} parent=1 // pred_region
      _
    $region13: #{mock_model_forward.1} parent=1 // pred_fallthru
      _
    // Predicated region
    $region14: #{mock_model_forward.1} parent=1 // pred_check
      _
    $region15: #{mock_model_forward.1} parent=1 // pred_check_branch
      %36 = sbr.rel (0) target = $region17
    $region16: #{mock_model_forward.1} parent=1 // pred_region
      %37 = dma.done [#allocation3], 128
    $region17: #{mock_model_forward.1} parent=1 // pred_fallthru
      _
    // Predicated region
    $region18: #{mock_model_forward.1} parent=1 // pred_check
      _
    $region19: #{mock_model_forward.1} parent=1 // pred_check_branch
      %39 = sbr.rel (0) target = $region21
    $region20: #{mock_model_forward.1} parent=1 // pred_region
      %40 = dma.done [#allocation6], 512
    $region21: #{mock_model_forward.1} parent=1 // pred_fallthru
      _
    %v41 = vld [vmem:[#allocation2] sm:$0xff]
    %v42 = vld [vmem:[#allocation5] sm:$0xff]
    %v43 = vld [vmem:[#allocation5 + $0x8] sm:$0xff]
    %v44 = vld [vmem:[#allocation5 + $0x10] sm:$0xff]
    %v45 = vld [vmem:[#allocation5 + $0x18] sm:$0xff]
    %v46 = vld [vmem:[%s2] sm:$0x1]
    %v48 = vlaneseq
    %v49 = vshrl.u32 %v48, 7
    %v50 = vsub.s32 0, %v49
    %v51 = vrot.slane %v46, %v50
    %vm53 = vcmask 261120
    %v55 = vsel %vm53, %v41, 0
    %57 = vmatprep.subr.mxu0 0.0
    %58 = vmatpush1.msra.mxu0 %v42
    %59 = vmatprep.subr.mxu0 0.0
    %60 = vmatpush1.msra.mxu0 %v43
    %61 = vmatprep.subr.mxu0 0.0
    %62 = vmatpush1.msra.mxu0 %v44
    %63 = vmatprep.subr.mxu0 0.0
    %64 = vmatpush1.msra.mxu0 %v45
    %65 = vmatprep.subr.mxu0 0.0
    %66 = vmatpush1.msra.mxu0 0.0
    %67 = vmatprep.subr.mxu0 0.0
    %68 = vmatpush1.msra.mxu0 0.0
    %69 = vmatprep.subr.mxu0 0.0
    %70 = vmatpush1.msra.mxu0 0.0
    %71 = vmatprep.subr.mxu0 0.0
    %72 = vmatpush1.msra.mxu0 0.0
    %73 = vmatprep.subr.mxu0 0.0
    %74 = vmatpush1.msra.mxu0 0.0
    %75 = vmatprep.subr.mxu0 0.0
    %76 = vmatpush1.msra.mxu0 0.0
    %77 = vmatprep.subr.mxu0 0.0
    %78 = vmatpush1.msra.mxu0 0.0
    %79 = vmatprep.subr.mxu0 0.0
    %80 = vmatpush1.msra.mxu0 0.0
    %81 = vmatprep.subr.mxu0 0.0
    %82 = vmatpush1.msra.mxu0 0.0
    %83 = vmatprep.subr.mxu0 0.0
    %84 = vmatpush1.msra.mxu0 0.0
    %85 = vmatprep.subr.mxu0 0.0
    %86 = vmatpush1.msra.mxu0 0.0
    %87 = vmatprep.subr.mxu0 0.0
    %88 = vmatpush1.msra.mxu0 0.0
    %89 = vmatprep.subr.mxu0 0.0
    %90 = vmatpush1.msra.mxu0 0.0
    %91 = vmatprep.subr.mxu0 0.0
    %92 = vmatpush1.msra.mxu0 0.0
    %93 = vmatprep.subr.mxu0 0.0
    %94 = vmatpush1.msra.mxu0 0.0
    %95 = vmatprep.subr.mxu0 0.0
    %96 = vmatpush1.msra.mxu0 0.0
    %97 = vmatprep.subr.mxu0 0.0
    %98 = vmatpush1.msra.mxu0 0.0
    %99 = vmatprep.subr.mxu0 0.0
    %100 = vmatpush1.msra.mxu0 0.0
    %101 = vmatprep.subr.mxu0 0.0
    %102 = vmatpush1.msra.mxu0 0.0
    %103 = vmatprep.subr.mxu0 0.0
    %104 = vmatpush1.msra.mxu0 0.0
    %105 = vmatprep.subr.mxu0 0.0
    %106 = vmatpush1.msra.mxu0 0.0
    %107 = vmatprep.subr.mxu0 0.0
    %108 = vmatpush1.msra.mxu0 0.0
    %109 = vmatprep.subr.mxu0 0.0
    %110 = vmatpush1.msra.mxu0 0.0
    %111 = vmatprep.subr.mxu0 0.0
    %112 = vmatpush1.msra.mxu0 0.0
    %113 = vmatprep.subr.mxu0 0.0
    %114 = vmatpush1.msra.mxu0 0.0
    %115 = vmatprep.subr.mxu0 0.0
    %116 = vmatpush1.msra.mxu0 0.0
    %117 = vmatprep.subr.mxu0 0.0
    %118 = vmatpush1.msra.mxu0 0.0
    %119 = vmatprep.subr.mxu0 0.0
    %120 = vmatpush1.msra.mxu0 0.0
    %121 = vmatprep.mubr.f32.mxu0 0.0
    %122 = vmatmul.mubr.f32.gmra.mrb[0].mxu0 %v55
    %v123 = vpop.f32.mrb[0].mxu0
    %v124 = vadd.f32 %v51, %v123
    %v125 = vpop.f32.mrb[0].mxu0
    %126 = vdwg.mxu0
    %127 = vst [vmem:[#allocation7] sm:$0xff] %v124
    // Predicated region
    $region22: #{mock_model_forward.1} parent=1 // pred_check
      _
    $region23: #{mock_model_forward.1} parent=1 // pred_check_branch
      %129 = sbr.rel (0) target = $region25
    $region24: #{mock_model_forward.1} parent=1 // pred_region
      %s131 = ssub.s32 128, 128
      %132 = vsyncadd [#allocation4], %s131
      %s134 = sshll.u32 [#allocation7], 4
      %s135 = int_to_ptr.vmem [resolvable:$true] %s134
      %137 = dma.vmem_to_hbm [thread:$0]  %s135, 128, %s3, [#allocation4]
    $region25: #{mock_model_forward.1} parent=1 // pred_fallthru
      _
    // Predicated region
    $region26: #{mock_model_forward.1} parent=1 // pred_check
      _
    $region27: #{mock_model_forward.1} parent=1 // pred_check_branch
      %139 = sbr.rel (0) target = $region29
    $region28: #{mock_model_forward.1} parent=1 // pred_region
      %140 = dma.done [#allocation4], 128
    $region29: #{mock_model_forward.1} parent=1 // pred_fallthru
      _
    %141 = vsyncpa [#allocation3], 1
    %142 = vsyncpa [#allocation6], 1
    %143 = vsyncpa [#allocation4], 1

</llo_original>
